<compile_context>
chip_gen: v7x
topology: tpu7x:2x2x1
jax: 0.10.0
libtpu: 0.0.40
codegen_flags: <defaults>
</compile_context>

<pallas_src>
import functools

import jax
import jax.numpy as jnp
from jax.experimental import pallas as pl
from jax.experimental.pallas import tpu as pltpu


def _round_up(v, m):
    return -(-v // m) * m


def tcn_kernel(xc_ref, xp_ref, xn_ref, w1_ref, b1_ref, w2_ref, b2_ref, out_ref, *, K):
    # xc_ref: (TS, E)  center rows of this sequence tile (compute dtype, e.g. bf16)
    # xp_ref: (HB, E)  rows just before the tile (garbage when s == 0 -> gated to 0)
    # xn_ref: (HB, E)  rows just after the tile (garbage when s == last -> gated to 0)
    # w1_ref: (K*E, E) fused temporal-conv weights; b1_ref: (1, E) f32
    # w2_ref: (E, E)   1x1-conv weights;            b2_ref: (1, E) f32
    # out_ref: (TS, E) f32
    TS, E = xc_ref.shape
    HB = xp_ref.shape[0]
    pad = K // 2

    xc = xc_ref[...]                                            # (TS, E)

    if pad > 0:
        s = pl.program_id(1)
        ns = pl.num_programs(1)
        prev_gate = jnp.where(s > 0, 1.0, 0.0).astype(xc.dtype)
        next_gate = jnp.where(s < ns - 1, 1.0, 0.0).astype(xc.dtype)
        prev = xp_ref[HB - pad:, :] * prev_gate                 # (pad, E)
        nxt = xn_ref[:pad, :] * next_gate                       # (pad, E)
        window = jnp.concatenate([prev, xc, nxt], axis=0)       # (TS + 2*pad, E)
    else:
        window = xc

    if E <= 128:
        # Fuse the K taps into a single deep-contraction MXU matmul:
        #   slab[t, k*E + e] = window[t + k, e];   conv = slab @ w1_fused
        slab = jnp.concatenate([window[k:k + TS, :] for k in range(K)], axis=1)
        acc = jnp.dot(slab, w1_ref[...], preferred_element_type=jnp.float32)
    else:
        # Large E: per-tap contraction is already deep; avoid the K-times slab in VMEM.
        acc = jnp.zeros((TS, E), jnp.float32)
        for k in range(K):
            acc = acc + jnp.dot(window[k:k + TS, :],
                                w1_ref[pl.ds(k * E, E), :],
                                preferred_element_type=jnp.float32)

    acc = acc + b1_ref[...]                                     # f32 bias
    h = jnp.maximum(acc, 0.0)                                   # ReLU in f32

    y = jnp.dot(h.astype(w2_ref.dtype), w2_ref[...],
                preferred_element_type=jnp.float32) + b2_ref[...]

    # Residual add from the center tile; dropout is identity in eval mode.
    # TODO(synk): training-mode dropout would use pltpu.prng_seed / prng_random_bits.
    out_ref[...] = (y + xc.astype(jnp.float32)).astype(out_ref.dtype)


def temporal_conv_layer(x, w1, b1, w2, b2, kernel_size, *, seq_tile=512,
                        compute_dtype=jnp.bfloat16):
    """x: (B, S, E) f32. w1: (E, 1, K, E), b1: (E,), w2: (E, E, 1, 1), b2: (E,)."""
    B, S, E = x.shape
    assert kernel_size % 2 == 1, "module semantics require odd kernel_size"
    pad = kernel_size // 2
    HB = 8                                   # halo block rows (sublane-aligned)
    assert pad <= HB, "kernel_size too large for 8-row halo blocks"

    # Sequence tiling: TS % 8 == 0 and TS * n_s == S_pad. Any trailing zero rows
    # are semantically identical to the conv's own zero padding and sliced off.
    S8 = _round_up(S, HB)
    n_s = -(-S8 // max(seq_tile, HB))
    TS = _round_up(-(-S // n_s), HB)
    S_pad = n_s * TS

    x_in = x.astype(compute_dtype)
    if S_pad != S:
        x_in = jnp.pad(x_in, ((0, 0), (0, S_pad - S), (0, 0)))

    # PyTorch conv2d weight (C_out=E, C_in=1, kH=K, kW=E) -> fused (K*E_in, E_out)
    # so that slab column (k*E + e_in) lines up with row (k*E + e_in).
    w1_fused = jnp.transpose(w1[:, 0, :, :], (1, 2, 0)).reshape(kernel_size * E, E)
    w1_fused = w1_fused.astype(compute_dtype)
    # 1x1 conv weight (C_out=E, C_in=E, 1, 1) -> (E_in, E_out)
    w2t = jnp.transpose(w2[:, :, 0, 0], (1, 0)).astype(compute_dtype)
    b1r = b1.reshape(1, E).astype(jnp.float32)
    b2r = b2.reshape(1, E).astype(jnp.float32)

    r = TS // HB
    n_hb = S_pad // HB

    kernel = functools.partial(tcn_kernel, K=kernel_size)
    out = pl.pallas_call(
        kernel,
        out_shape=jax.ShapeDtypeStruct((B, S_pad, E), x.dtype),
        grid=(B, n_s),
        in_specs=[
            # center tile
            pl.BlockSpec((None, TS, E), lambda b, s: (b, s, 0)),
            # left halo: 8 rows ending at the tile start (clamped at seq start)
            pl.BlockSpec((None, HB, E),
                         lambda b, s: (b, jnp.maximum(s * r - 1, 0), 0)),
            # right halo: 8 rows starting at the tile end (clamped at seq end)
            pl.BlockSpec((None, HB, E),
                         lambda b, s: (b, jnp.minimum((s + 1) * r, n_hb - 1), 0)),
            pl.BlockSpec((kernel_size * E, E), lambda b, s: (0, 0)),   # w1 fused
            pl.BlockSpec((1, E), lambda b, s: (0, 0)),                 # b1
            pl.BlockSpec((E, E), lambda b, s: (0, 0)),                 # w2
            pl.BlockSpec((1, E), lambda b, s: (0, 0)),                 # b2
        ],
        out_specs=pl.BlockSpec((None, TS, E), lambda b, s: (b, s, 0)),
        compiler_params=pltpu.CompilerParams(
            dimension_semantics=("parallel", "parallel"),
            vmem_limit_bytes=40 * 1024 * 1024,
        ),
    )(x_in, x_in, x_in, w1_fused, b1r, w2t, b2r)

    return out[:, :S, :] if S_pad != S else out


def reference_forward(x, w1, b1, w2, b2, K):
    """Pure-JAX f32 reference mirroring the PyTorch forward (eval mode)."""
    B, S, E = x.shape
    pad = K // 2
    xpad = jnp.pad(x, ((0, 0), (pad, pad), (0, 0)))
    windows = jnp.stack([xpad[:, k:k + S, :] for k in range(K)], axis=2)  # (B,S,K,E)
    conv = jnp.einsum('bske,cke->bsc', windows, w1[:, 0, :, :]) + b1      # (B,S,E)
    h = jnp.maximum(conv, 0.0)
    y = jnp.einsum('bsc,dc->bsd', h, w2[:, :, 0, 0]) + b2
    return y + x


if __name__ == "__main__":
    def run_case(B, S, E, K, seq_tile=512):
        key = jax.random.PRNGKey(0)
        k1, k2, k3, k4, k5 = jax.random.split(key, 5)
        x = jax.random.normal(k1, (B, S, E), dtype=jnp.float32)
        fan1 = 1 * K * E
        w1 = jax.random.uniform(k2, (E, 1, K, E), jnp.float32, -1.0, 1.0) / jnp.sqrt(fan1)
        b1 = jax.random.uniform(k3, (E,), jnp.float32, -1.0, 1.0) / jnp.sqrt(fan1)
        w2 = jax.random.uniform(k4, (E, E, 1, 1), jnp.float32, -1.0, 1.0) / jnp.sqrt(E)
        b2 = jax.random.uniform(k5, (E,), jnp.float32, -1.0, 1.0) / jnp.sqrt(E)

        out = temporal_conv_layer(x, w1, b1, w2, b2, K, seq_tile=seq_tile)
        out = jax.block_until_ready(out)
        ref = reference_forward(x, w1, b1, w2, b2, K)
        assert out.shape == (B, S, E)
        # bf16 MXU operands (with f32 accumulation) -> small drift vs the f32 reference.
        assert jnp.allclose(out, ref, atol=5e-2, rtol=5e-2), \
            f"mismatch vs reference (B={B}, S={S}, E={E}, K={K})"

    run_case(2, 16, 32, 5)                 # single sequence tile, halos gated off
    run_case(2, 44, 32, 7, seq_tile=16)    # multi-tile halos + trailing-pad path
    print("KERNEL_OK")
</pallas_src>

<mosaic_0001>
module attributes {stable_mosaic.version = 11 : i64} {
  func.func @tcn_kernel(%arg0: i32, %arg1: i32, %arg2: memref<1x16x32xbf16, #tpu.memory_space<vmem>>, %arg3: memref<1x8x32xbf16, #tpu.memory_space<vmem>>, %arg4: memref<1x8x32xbf16, #tpu.memory_space<vmem>>, %arg5: memref<160x32xbf16, #tpu.memory_space<vmem>>, %arg6: memref<1x32xf32, #tpu.memory_space<vmem>>, %arg7: memref<32x32xbf16, #tpu.memory_space<vmem>>, %arg8: memref<1x32xf32, #tpu.memory_space<vmem>>, %arg9: memref<1x16x32xf32, #tpu.memory_space<vmem>>) attributes {dimension_semantics = [#tpu.dimension_semantics<parallel>, #tpu.dimension_semantics<parallel>], iteration_bounds = array<i64: 2, 1>, scalar_prefetch = 0 : i64, scratch_operands = 0 : i64, tpu.core_type = #tpu.core_type<tc>, window_params = [{transform_indices = @transform_0, window_bounds = array<i64: 1, 16, 32>}, {transform_indices = @transform_1, window_bounds = array<i64: 1, 8, 32>}, {transform_indices = @transform_2, window_bounds = array<i64: 1, 8, 32>}, {pipeline_mode = #tpu.pipeline_mode<synchronous>, transform_indices = @transform_3, window_bounds = array<i64: 160, 32>}, {pipeline_mode = #tpu.pipeline_mode<synchronous>, transform_indices = @transform_4, window_bounds = array<i64: 1, 32>}, {pipeline_mode = #tpu.pipeline_mode<synchronous>, transform_indices = @transform_5, window_bounds = array<i64: 32, 32>}, {pipeline_mode = #tpu.pipeline_mode<synchronous>, transform_indices = @transform_6, window_bounds = array<i64: 1, 32>}, {transform_indices = @transform_7, window_bounds = array<i64: 1, 16, 32>}]} {
    %c0 = arith.constant 0 : index
    %c0_0 = arith.constant 0 : index
    %c0_1 = arith.constant 0 : index
    %0 = vector.load %arg2[%c0, %c0_0, %c0_1] : memref<1x16x32xbf16, #tpu.memory_space<vmem>>, vector<1x16x32xbf16>
    %1 = vector.shape_cast %0 : vector<1x16x32xbf16> to vector<16x32xbf16>
    %c0_i32 = arith.constant 0 : i32
    %2 = arith.cmpi sgt, %arg1, %c0_i32 : i32
    %cst = arith.constant 1.000000e+00 : f32
    %cst_2 = arith.constant 0.000000e+00 : f32
    %3 = arith.select %2, %cst, %cst_2 : f32
    %4 = arith.truncf %3 : f32 to bf16
    %c0_i32_3 = arith.constant 0 : i32
    %5 = arith.cmpi slt, %arg1, %c0_i32_3 : i32
    %cst_4 = arith.constant 1.000000e+00 : f32
    %cst_5 = arith.constant 0.000000e+00 : f32
    %6 = arith.select %5, %cst_4, %cst_5 : f32
    %7 = arith.truncf %6 : f32 to bf16
    %c0_6 = arith.constant 0 : index
    %c6 = arith.constant 6 : index
    %c0_7 = arith.constant 0 : index
    %8 = vector.load %arg3[%c0_6, %c6, %c0_7] : memref<1x8x32xbf16, #tpu.memory_space<vmem>>, vector<1x2x32xbf16>
    %9 = vector.shape_cast %8 : vector<1x2x32xbf16> to vector<2x32xbf16>
    %10 = vector.broadcast %4 : bf16 to vector<2x32xbf16>
    %11 = arith.mulf %9, %10 : vector<2x32xbf16>
    %c0_8 = arith.constant 0 : index
    %c0_9 = arith.constant 0 : index
    %c0_10 = arith.constant 0 : index
    %12 = vector.load %arg4[%c0_8, %c0_9, %c0_10] : memref<1x8x32xbf16, #tpu.memory_space<vmem>>, vector<1x2x32xbf16>
    %13 = vector.shape_cast %12 : vector<1x2x32xbf16> to vector<2x32xbf16>
    %14 = vector.broadcast %7 : bf16 to vector<2x32xbf16>
    %15 = arith.mulf %13, %14 : vector<2x32xbf16>
    %16 = tpu.concatenate %11, %1, %15 in 0 : vector<2x32xbf16>, vector<16x32xbf16>, vector<2x32xbf16> -> vector<20x32xbf16>
    %17 = vector.extract_strided_slice %16 {offsets = [0, 0], sizes = [16, 32], strides = [1, 1]} : vector<20x32xbf16> to vector<16x32xbf16>
    %18 = vector.extract_strided_slice %16 {offsets = [1, 0], sizes = [16, 32], strides = [1, 1]} : vector<20x32xbf16> to vector<16x32xbf16>
    %19 = vector.extract_strided_slice %16 {offsets = [2, 0], sizes = [16, 32], strides = [1, 1]} : vector<20x32xbf16> to vector<16x32xbf16>
    %20 = vector.extract_strided_slice %16 {offsets = [3, 0], sizes = [16, 32], strides = [1, 1]} : vector<20x32xbf16> to vector<16x32xbf16>
    %21 = vector.extract_strided_slice %16 {offsets = [4, 0], sizes = [16, 32], strides = [1, 1]} : vector<20x32xbf16> to vector<16x32xbf16>
    %22 = tpu.concatenate %17, %18, %19, %20, %21 in 1 : vector<16x32xbf16>, vector<16x32xbf16>, vector<16x32xbf16>, vector<16x32xbf16>, vector<16x32xbf16> -> vector<16x160xbf16>
    %c0_11 = arith.constant 0 : index
    %c0_12 = arith.constant 0 : index
    %23 = vector.load %arg5[%c0_11, %c0_12] : memref<160x32xbf16, #tpu.memory_space<vmem>>, vector<160x32xbf16>
    %cst_13 = arith.constant dense<0.000000e+00> : vector<16x32xf32>
    %24 = tpu.matmul %22, %23, %cst_13 {dimension_numbers = #tpu.dot_dimension_numbers<[1], [0], [0], [1], [0, 0, 1, 1], [], []>} : vector<16x160xbf16>, vector<160x32xbf16>, vector<16x32xf32> -> vector<16x32xf32>
    %c0_14 = arith.constant 0 : index
    %c0_15 = arith.constant 0 : index
    %25 = vector.load %arg6[%c0_14, %c0_15] : memref<1x32xf32, #tpu.memory_space<vmem>>, vector<1x32xf32>
    %26 = vector.broadcast %25 : vector<1x32xf32> to vector<16x32xf32>
    %27 = arith.addf %24, %26 : vector<16x32xf32>
    %cst_16 = arith.constant 0.000000e+00 : f32
    %28 = vector.broadcast %cst_16 : f32 to vector<16x32xf32>
    %29 = arith.maximumf %27, %28 : vector<16x32xf32>
    %30 = arith.truncf %29 : vector<16x32xf32> to vector<16x32xbf16>
    %c0_17 = arith.constant 0 : index
    %c0_18 = arith.constant 0 : index
    %31 = vector.load %arg7[%c0_17, %c0_18] : memref<32x32xbf16, #tpu.memory_space<vmem>>, vector<32x32xbf16>
    %cst_19 = arith.constant dense<0.000000e+00> : vector<16x32xf32>
    %32 = tpu.matmul %30, %31, %cst_19 {dimension_numbers = #tpu.dot_dimension_numbers<[1], [0], [0], [1], [0, 0, 1, 1], [], []>} : vector<16x32xbf16>, vector<32x32xbf16>, vector<16x32xf32> -> vector<16x32xf32>
    %c0_20 = arith.constant 0 : index
    %c0_21 = arith.constant 0 : index
    %33 = vector.load %arg8[%c0_20, %c0_21] : memref<1x32xf32, #tpu.memory_space<vmem>>, vector<1x32xf32>
    %34 = vector.broadcast %33 : vector<1x32xf32> to vector<16x32xf32>
    %35 = arith.addf %32, %34 : vector<16x32xf32>
    %36 = arith.extf %1 : vector<16x32xbf16> to vector<16x32xf32>
    %37 = arith.addf %35, %36 : vector<16x32xf32>
    %c0_22 = arith.constant 0 : index
    %c0_23 = arith.constant 0 : index
    %c0_24 = arith.constant 0 : index
    %38 = vector.load %arg9[%c0_22, %c0_23, %c0_24] : memref<1x16x32xf32, #tpu.memory_space<vmem>>, vector<1x16x32xf32>
    %39 = vector.shape_cast %38 : vector<1x16x32xf32> to vector<16x32xf32>
    %40 = vector.shape_cast %37 : vector<16x32xf32> to vector<1x16x32xf32>
    tpu.vector_store %arg9[%c0_22, %c0_23, %c0_24], %40 {strides = array<i32>} : memref<1x16x32xf32, #tpu.memory_space<vmem>>, vector<1x16x32xf32>,
    return
  }
  func.func @transform_0(%arg0: i32, %arg1: i32) -> (i32, i32, i32) {
    %c0_i32 = arith.constant 0 : i32
    %c0_i32_0 = arith.constant 0 : i32
    return %arg0, %arg1, %c0_i32 : i32, i32, i32
  }
  func.func @transform_1(%arg0: i32, %arg1: i32) -> (i32, i32, i32) {
    %c2_i32 = arith.constant 2 : i32
    %0 = arith.muli %arg1, %c2_i32 : i32
    %c1_i32 = arith.constant 1 : i32
    %1 = arith.subi %0, %c1_i32 : i32
    %c0_i32 = arith.constant 0 : i32
    %2 = arith.maxsi %1, %c0_i32 : i32
    %c0_i32_0 = arith.constant 0 : i32
    %c0_i32_1 = arith.constant 0 : i32
    return %arg0, %2, %c0_i32_0 : i32, i32, i32
  }
  func.func @transform_2(%arg0: i32, %arg1: i32) -> (i32, i32, i32) {
    %c1_i32 = arith.constant 1 : i32
    %0 = arith.addi %arg1, %c1_i32 : i32
    %c2_i32 = arith.constant 2 : i32
    %1 = arith.muli %0, %c2_i32 : i32
    %c1_i32_0 = arith.constant 1 : i32
    %2 = arith.minsi %1, %c1_i32_0 : i32
    %c0_i32 = arith.constant 0 : i32
    %c0_i32_1 = arith.constant 0 : i32
    return %arg0, %2, %c0_i32 : i32, i32, i32
  }
  func.func @transform_3(%arg0: i32, %arg1: i32) -> (i32, i32) {
    %c0_i32 = arith.constant 0 : i32
    %c0_i32_0 = arith.constant 0 : i32
    %c0_i32_1 = arith.constant 0 : i32
    return %c0_i32, %c0_i32_0 : i32, i32
  }
  func.func @transform_4(%arg0: i32, %arg1: i32) -> (i32, i32) {
    %c0_i32 = arith.constant 0 : i32
    %c0_i32_0 = arith.constant 0 : i32
    %c0_i32_1 = arith.constant 0 : i32
    return %c0_i32, %c0_i32_0 : i32, i32
  }
  func.func @transform_5(%arg0: i32, %arg1: i32) -> (i32, i32) {
    %c0_i32 = arith.constant 0 : i32
    %c0_i32_0 = arith.constant 0 : i32
    %c0_i32_1 = arith.constant 0 : i32
    return %c0_i32, %c0_i32_0 : i32, i32
  }
  func.func @transform_6(%arg0: i32, %arg1: i32) -> (i32, i32) {
    %c0_i32 = arith.constant 0 : i32
    %c0_i32_0 = arith.constant 0 : i32
    %c0_i32_1 = arith.constant 0 : i32
    return %c0_i32, %c0_i32_0 : i32, i32
  }
  func.func @transform_7(%arg0: i32, %arg1: i32) -> (i32, i32, i32) {
    %c0_i32 = arith.constant 0 : i32
    %c0_i32_0 = arith.constant 0 : i32
    return %arg0, %arg1, %c0_i32 : i32, i32, i32
  }
}

</mosaic_0001>

<llo_original>
// kernel: tpu_custom_call.1
$region0: #{tpu_custom_call.1}
  #allocation0 [shape = 'u32[]', space=smem, size = 0x4, offset = 0x4, fixed_abs, tag = 'smem constant byte address 0x4 - core index']
  #allocation1 [shape = 'u32[144,128]{1,0:T(1,128)}', space=vmem, size = 0x12000, scoped, tag = 'internal scratch']
  %s0 = inlined_call_operand.vmem [shape: bf16[2,16,32], index: 0, kind: input, shape index: {}]
  %s1 = inlined_call_operand.vmem [shape: bf16[2,16,32], index: 1, kind: input, shape index: {}]
  %s2 = inlined_call_operand.vmem [shape: bf16[2,16,32], index: 2, kind: input, shape index: {}]
  %s3 = inlined_call_operand.vmem [shape: bf16[160,32], index: 3, kind: input, shape index: {}]
  %s4 = inlined_call_operand.vmem [shape: f32[1,32], index: 4, kind: input, shape index: {}]
  %s5 = inlined_call_operand.vmem [shape: bf16[32,32], index: 5, kind: input, shape index: {}]
  %s6 = inlined_call_operand.vmem [shape: f32[1,32], index: 6, kind: input, shape index: {}]
  %s7 = inlined_call_operand.hbm [shape: f32[2,16,32], index: 7, kind: output, shape index: {}]
  %s8 = sld [smem:[#allocation0]]
  $region61: #{tpu_custom_call.1} parent=0
    _
  %s10 = ssub.s32 1, %s8
  %s11 = scalar_select 0, %s10, %s8
  $region1: #{tpu_custom_call.1} parent=0
    #allocation2 [shape = 'u8[16384]{0}', space=vmem, size = 0x4000, scoped, tag = 'output window, operand 0']
    #allocation3 [shape = 's32[2]{0}', space=sflag, size = 0x8, scoped, tag = 'scoped memory for tpu_custom_call.1']
    %12 = vsyncpa [#allocation3], 0
    %s13 = scalar_lea.sflag [#allocation3], 1
    %14 = vsyncpa %s13, 0
    loop: start=0, step=1, limit=4
    $region2: #{tpu_custom_call.1} parent=1 // loop_pre_header
      _
    $region3: #{tpu_custom_call.1} parent=1 // loop_header
      %s16 = sphi 0, %s20
      %p17 = scmp.ge.s32.totalorder %s16, 4
      %s23 = sphi 0, %s35
      %s24 = sphi 0, %s31
      %s25 = sphi 0, %s23
      %s26 = sphi 0, %s24
      %s27 = sphi 0, %s25
      %s28 = sphi 0, %s26
      %s40 = sphi 0, %s42
      %s43 = sphi 0, %s40
      %s44 = sphi 0, %s43
      %s60 = sphi 0, %s44
      %s76 = sphi 0, %s78
      %s79 = sphi 0, %s76
      %s80 = sphi 0, %s79
      %s96 = sphi 0, %s80
      %s112 = sphi 0, %s114
      %s115 = sphi 0, %s112
      %s116 = sphi 0, %s115
      %s132 = sphi 0, %s116
      %s136 = sphi 0, %s136
      %s138 = sphi 0, %s136
      %s139 = sphi 0, %s138
      %s153 = sphi 0, %s139
      %s157 = sphi 0, %s157
      %s159 = sphi 0, %s157
      %s160 = sphi 0, %s159
      %s174 = sphi 0, %s160
      %s178 = sphi 0, %s178
      %s180 = sphi 0, %s178
      %s181 = sphi 0, %s180
      %s195 = sphi 0, %s181
      %s199 = sphi 0, %s199
      %s201 = sphi 0, %s199
      %s202 = sphi 0, %s201
      %s216 = sphi 0, %s202
      %s224 = sphi 0, %s226
      %s227 = sphi 0, %s224
      %s228 = sphi 0, %s227
      %s244 = sphi 0, %s228
    $region4: #{tpu_custom_call.1} parent=1 // loop_header_branch
      %19 = sbr.rel (%p17) target = $region8
    $region5: #{tpu_custom_call.1} parent=1 // loop_body
      %s21 = ssub.s32 %s16, 1
      %s22 = ssub.s32 %s16, 2
      %s29 = sadd.s32 1, %s24
      %p30 = scmp.ge.s32.totalorder %s29, 1
      %s31 = scalar_select %p30, 0, %s29
      %s32 = sadd.s32 1, %s23
      %s33 = scalar_select %p30, %s32, %s23
      %p34 = scmp.ge.s32.totalorder %s33, 2
      %s35 = scalar_select %p34, 0, %s33
      %s36 = ssub.s32 %s23, %s35
      %s37 = ssub.s32 %s24, %s31
      %s38 = sor.u32 %s36, %s37
      %p39 = scmp.eq.s32.totalorder %s38, 0
      %s41 = sadd.s32 %s40, 1
      %s42 = scalar_select %p39, %s40, %s41
      %p45 = pneg %p39
      %p46 = scmp.eq.s32.totalorder %s16, 1
      %p47 = por %p45, %p46
      %p48 = scmp.ne.s32.totalorder %s40, %s43
      %p49 = scmp.eq.s32.totalorder %s16, 0
      %p50 = por %p48, %p49
      %p51 = scmp.ne.s32.totalorder %s40, %s43
      %p52 = scmp.eq.s32.totalorder %s21, 1
      %p53 = por %p51, %p52
      %p54 = scmp.ne.s32.totalorder %s43, %s44
      %p55 = scmp.eq.s32.totalorder %s21, 0
      %p56 = por %p54, %p55
      %p57 = scmp.ne.s32.totalorder %s43, %s44
      %p58 = scmp.eq.s32.totalorder %s22, 1
      %p59 = por %p57, %p58
      %p61 = scmp.ne.s32.totalorder %s44, %s60
      %p62 = scmp.eq.s32.totalorder %s22, 0
      %p63 = por %p61, %p62
      %s64 = smul.u32 %s24, 2
      %s65 = ssub.s32 %s64, 1
      %p66 = scmp.gt.s32.totalorder %s65, 0
      %s67 = scalar_select %p66, %s65, 0
      %s68 = smul.u32 %s31, 2
      %s69 = ssub.s32 %s68, 1
      %p70 = scmp.gt.s32.totalorder %s69, 0
      %s71 = scalar_select %p70, %s69, 0
      %s72 = ssub.s32 %s23, %s35
      %s73 = ssub.s32 %s67, %s71
      %s74 = sor.u32 %s72, %s73
      %p75 = scmp.eq.s32.totalorder %s74, 0
      %s77 = sadd.s32 %s76, 1
      %s78 = scalar_select %p75, %s76, %s77
      %p81 = pneg %p75
      %p82 = scmp.eq.s32.totalorder %s16, 1
      %p83 = por %p81, %p82
      %p84 = scmp.ne.s32.totalorder %s76, %s79
      %p85 = scmp.eq.s32.totalorder %s16, 0
      %p86 = por %p84, %p85
      %p87 = scmp.ne.s32.totalorder %s76, %s79
      %p88 = scmp.eq.s32.totalorder %s21, 1
      %p89 = por %p87, %p88
      %p90 = scmp.ne.s32.totalorder %s79, %s80
      %p91 = scmp.eq.s32.totalorder %s21, 0
      %p92 = por %p90, %p91
      %p93 = scmp.ne.s32.totalorder %s79, %s80
      %p94 = scmp.eq.s32.totalorder %s22, 1
      %p95 = por %p93, %p94
      %p97 = scmp.ne.s32.totalorder %s80, %s96
      %p98 = scmp.eq.s32.totalorder %s22, 0
      %p99 = por %p97, %p98
      %s100 = sadd.s32 %s24, 1
      %s101 = smul.u32 %s100, 2
      %p102 = scmp.lt.s32.totalorder %s101, 1
      %s103 = scalar_select %p102, %s101, 1
      %s104 = sadd.s32 %s31, 1
      %s105 = smul.u32 %s104, 2
      %p106 = scmp.lt.s32.totalorder %s105, 1
      %s107 = scalar_select %p106, %s105, 1
      %s108 = ssub.s32 %s23, %s35
      %s109 = ssub.s32 %s103, %s107
      %s110 = sor.u32 %s108, %s109
      %p111 = scmp.eq.s32.totalorder %s110, 0
      %s113 = sadd.s32 %s112, 1
      %s114 = scalar_select %p111, %s112, %s113
      %p117 = pneg %p111
      %p118 = scmp.eq.s32.totalorder %s16, 1
      %p119 = por %p117, %p118
      %p120 = scmp.ne.s32.totalorder %s112, %s115
      %p121 = scmp.eq.s32.totalorder %s16, 0
      %p122 = por %p120, %p121
      %p123 = scmp.ne.s32.totalorder %s112, %s115
      %p124 = scmp.eq.s32.totalorder %s21, 1
      %p125 = por %p123, %p124
      %p126 = scmp.ne.s32.totalorder %s115, %s116
      %p127 = scmp.eq.s32.totalorder %s21, 0
      %p128 = por %p126, %p127
      %p129 = scmp.ne.s32.totalorder %s115, %s116
      %p130 = scmp.eq.s32.totalorder %s22, 1
      %p131 = por %p129, %p130
      %p133 = scmp.ne.s32.totalorder %s116, %s132
      %p134 = scmp.eq.s32.totalorder %s22, 0
      %p135 = por %p133, %p134
      %s137 = sadd.s32 %s136, 1
      %p140 = scmp.eq.s32.totalorder %s16, 1
      %p141 = scmp.ne.s32.totalorder %s136, %s138
      %p142 = scmp.eq.s32.totalorder %s16, 0
      %p143 = por %p141, %p142
      %p144 = scmp.ne.s32.totalorder %s136, %s138
      %p145 = scmp.eq.s32.totalorder %s21, 1
      %p146 = por %p144, %p145
      %p147 = scmp.ne.s32.totalorder %s138, %s139
      %p148 = scmp.eq.s32.totalorder %s21, 0
      %p149 = por %p147, %p148
      %p150 = scmp.ne.s32.totalorder %s138, %s139
      %p151 = scmp.eq.s32.totalorder %s22, 1
      %p152 = por %p150, %p151
      %p154 = scmp.ne.s32.totalorder %s139, %s153
      %p155 = scmp.eq.s32.totalorder %s22, 0
      %p156 = por %p154, %p155
      %s158 = sadd.s32 %s157, 1
      %p161 = scmp.eq.s32.totalorder %s16, 1
      %p162 = scmp.ne.s32.totalorder %s157, %s159
      %p163 = scmp.eq.s32.totalorder %s16, 0
      %p164 = por %p162, %p163
      %p165 = scmp.ne.s32.totalorder %s157, %s159
      %p166 = scmp.eq.s32.totalorder %s21, 1
      %p167 = por %p165, %p166
      %p168 = scmp.ne.s32.totalorder %s159, %s160
      %p169 = scmp.eq.s32.totalorder %s21, 0
      %p170 = por %p168, %p169
      %p171 = scmp.ne.s32.totalorder %s159, %s160
      %p172 = scmp.eq.s32.totalorder %s22, 1
      %p173 = por %p171, %p172
      %p175 = scmp.ne.s32.totalorder %s160, %s174
      %p176 = scmp.eq.s32.totalorder %s22, 0
      %p177 = por %p175, %p176
      %s179 = sadd.s32 %s178, 1
      %p182 = scmp.eq.s32.totalorder %s16, 1
      %p183 = scmp.ne.s32.totalorder %s178, %s180
      %p184 = scmp.eq.s32.totalorder %s16, 0
      %p185 = por %p183, %p184
      %p186 = scmp.ne.s32.totalorder %s178, %s180
      %p187 = scmp.eq.s32.totalorder %s21, 1
      %p188 = por %p186, %p187
      %p189 = scmp.ne.s32.totalorder %s180, %s181
      %p190 = scmp.eq.s32.totalorder %s21, 0
      %p191 = por %p189, %p190
      %p192 = scmp.ne.s32.totalorder %s180, %s181
      %p193 = scmp.eq.s32.totalorder %s22, 1
      %p194 = por %p192, %p193
      %p196 = scmp.ne.s32.totalorder %s181, %s195
      %p197 = scmp.eq.s32.totalorder %s22, 0
      %p198 = por %p196, %p197
      %s200 = sadd.s32 %s199, 1
      %p203 = scmp.eq.s32.totalorder %s16, 1
      %p204 = scmp.ne.s32.totalorder %s199, %s201
      %p205 = scmp.eq.s32.totalorder %s16, 0
      %p206 = por %p204, %p205
      %p207 = scmp.ne.s32.totalorder %s199, %s201
      %p208 = scmp.eq.s32.totalorder %s21, 1
      %p209 = por %p207, %p208
      %p210 = scmp.ne.s32.totalorder %s201, %s202
      %p211 = scmp.eq.s32.totalorder %s21, 0
      %p212 = por %p210, %p211
      %p213 = scmp.ne.s32.totalorder %s201, %s202
      %p214 = scmp.eq.s32.totalorder %s22, 1
      %p215 = por %p213, %p214
      %p217 = scmp.ne.s32.totalorder %s202, %s216
      %p218 = scmp.eq.s32.totalorder %s22, 0
      %p219 = por %p217, %p218
      %s220 = ssub.s32 %s23, %s35
      %s221 = ssub.s32 %s24, %s31
      %s222 = sor.u32 %s220, %s221
      %p223 = scmp.eq.s32.totalorder %s222, 0
      %s225 = sadd.s32 %s224, 1
      %s226 = scalar_select %p223, %s224, %s225
      %p229 = pneg %p223
      %p230 = scmp.eq.s32.totalorder %s16, 1
      %p231 = por %p229, %p230
      %p232 = scmp.ne.s32.totalorder %s224, %s227
      %p233 = scmp.eq.s32.totalorder %s16, 0
      %p234 = por %p232, %p233
      %p235 = scmp.ne.s32.totalorder %s224, %s227
      %p236 = scmp.eq.s32.totalorder %s21, 1
      %p237 = por %p235, %p236
      %p238 = scmp.ne.s32.totalorder %s227, %s228
      %p239 = scmp.eq.s32.totalorder %s21, 0
      %p240 = por %p238, %p239
      %p241 = scmp.ne.s32.totalorder %s227, %s228
      %p242 = scmp.eq.s32.totalorder %s22, 1
      %p243 = por %p241, %p242
      %p245 = scmp.ne.s32.totalorder %s228, %s244
      %p246 = scmp.eq.s32.totalorder %s22, 0
      %p247 = por %p245, %p246
      %p248 = scmp.le.s32.totalorder 1, %s16
      %p249 = scmp.lt.s32.totalorder %s16, 3
      %p250 = pnand %p248, %p249
      %p251 = pneg %p250
      // Predicated region
      $region9: #{tpu_custom_call.1} parent=5 // pred_check
        _
      $region10: #{tpu_custom_call.1} parent=5 // pred_check_branch
        %253 = sbr.rel (%p250) target = $region12
      $region11: #{tpu_custom_call.1} parent=5 // pred_region
        %s254 = ssub.s32 %s16, 1
        // Predicated region
        $region13: #{tpu_custom_call.1} parent=11 // pred_check
          %p255 = pneg %p149
        $region14: #{tpu_custom_call.1} parent=11 // pred_check_branch
          %257 = sbr.rel (%p255) target = $region16
        $region15: #{tpu_custom_call.1} parent=11 // pred_region
          _
        $region16: #{tpu_custom_call.1} parent=11 // pred_fallthru
          _
        // Predicated region
        $region17: #{tpu_custom_call.1} parent=11 // pred_check
          %p258 = pneg %p170
        $region18: #{tpu_custom_call.1} parent=11 // pred_check_branch
          %260 = sbr.rel (%p258) target = $region20
        $region19: #{tpu_custom_call.1} parent=11 // pred_region
          _
        $region20: #{tpu_custom_call.1} parent=11 // pred_fallthru
          _
        // Predicated region
        $region21: #{tpu_custom_call.1} parent=11 // pred_check
          %p261 = pneg %p191
        $region22: #{tpu_custom_call.1} parent=11 // pred_check_branch
          %263 = sbr.rel (%p261) target = $region24
        $region23: #{tpu_custom_call.1} parent=11 // pred_region
          _
        $region24: #{tpu_custom_call.1} parent=11 // pred_fallthru
          _
        // Predicated region
        $region25: #{tpu_custom_call.1} parent=11 // pred_check
          %p264 = pneg %p212
        $region26: #{tpu_custom_call.1} parent=11 // pred_check_branch
          %266 = sbr.rel (%p264) target = $region28
        $region27: #{tpu_custom_call.1} parent=11 // pred_region
          _
        $region28: #{tpu_custom_call.1} parent=11 // pred_fallthru
          _
      $region12: #{tpu_custom_call.1} parent=5 // pred_fallthru
        _
      %p267 = scmp.lt.s32.totalorder %s16, 2
      // Predicated region
      $region29: #{tpu_custom_call.1} parent=5 // pred_check
        %p268 = pneg %p267
      $region30: #{tpu_custom_call.1} parent=5 // pred_check_branch
        %270 = sbr.rel (%p268) target = $region32
      $region31: #{tpu_custom_call.1} parent=5 // pred_region
        // Predicated region
        $region33: #{tpu_custom_call.1} parent=31 // pred_check
          %p271 = pneg %p50
        $region34: #{tpu_custom_call.1} parent=31 // pred_check_branch
          %273 = sbr.rel (%p271) target = $region36
        $region35: #{tpu_custom_call.1} parent=31 // pred_region
          %s274 = smul.u32 2, %s24
          %p275 = scmp.lt.s32.totalorder %s23, 1
          %s276 = scalar_select %p275, %s23, 1
          %p277 = scmp.lt.s32.totalorder %s274, 1
          %s278 = scalar_select %p277, %s274, 1
          %s279 = smul.addr %s276, 2
          %s280 = sadd.s32 %s278, %s279
          %s281 = smul.addr %s280, 4
          %s282 = scalar_lea.vmem %s0, %s281
          %s283 = smul.u32 2, %s24
        $region36: #{tpu_custom_call.1} parent=31 // pred_fallthru
          _
        // Predicated region
        $region37: #{tpu_custom_call.1} parent=31 // pred_check
          %p284 = pneg %p86
        $region38: #{tpu_custom_call.1} parent=31 // pred_check_branch
          %286 = sbr.rel (%p284) target = $region40
        $region39: #{tpu_custom_call.1} parent=31 // pred_region
          %s287 = smul.u32 %s24, 2
          %s288 = ssub.s32 %s287, 1
          %p289 = scmp.gt.s32.totalorder %s288, 0
          %s290 = scalar_select %p289, %s288, 0
          %p291 = scmp.lt.s32.totalorder %s23, 1
          %s292 = scalar_select %p291, %s23, 1
          %p293 = scmp.lt.s32.totalorder %s290, 1
          %s294 = scalar_select %p293, %s290, 1
          %s295 = smul.addr %s292, 2
          %s296 = sadd.s32 %s294, %s295
          %s297 = smul.addr %s296, 4
          %s298 = scalar_lea.vmem %s1, %s297
          %s299 = smul.u32 %s24, 2
          %s300 = ssub.s32 %s299, 1
          %p301 = scmp.gt.s32.totalorder %s300, 0
          %s302 = scalar_select %p301, %s300, 0
        $region40: #{tpu_custom_call.1} parent=31 // pred_fallthru
          _
        // Predicated region
        $region41: #{tpu_custom_call.1} parent=31 // pred_check
          %p303 = pneg %p122
        $region42: #{tpu_custom_call.1} parent=31 // pred_check_branch
          %305 = sbr.rel (%p303) target = $region44
        $region43: #{tpu_custom_call.1} parent=31 // pred_region
          %s306 = sadd.s32 %s24, 1
          %s307 = smul.u32 %s306, 2
          %p308 = scmp.lt.s32.totalorder %s307, 1
          %s309 = scalar_select %p308, %s307, 1
          %p310 = scmp.lt.s32.totalorder %s23, 1
          %s311 = scalar_select %p310, %s23, 1
          %p312 = scmp.lt.s32.totalorder %s309, 1
          %s313 = scalar_select %p312, %s309, 1
          %s314 = smul.addr %s311, 2
          %s315 = sadd.s32 %s313, %s314
          %s316 = smul.addr %s315, 4
          %s317 = scalar_lea.vmem %s2, %s316
          %s318 = sadd.s32 %s24, 1
          %s319 = smul.u32 %s318, 2
          %p320 = scmp.lt.s32.totalorder %s319, 1
          %s321 = scalar_select %p320, %s319, 1
        $region44: #{tpu_custom_call.1} parent=31 // pred_fallthru
          _
      $region32: #{tpu_custom_call.1} parent=5 // pred_fallthru
        _
      %p322 = scmp.le.s32.totalorder 1, %s16
      %p323 = scmp.lt.s32.totalorder %s16, 3
      %p324 = pnand %p322, %p323
      %p325 = pneg %p324
      // Predicated region
      $region45: #{tpu_custom_call.1} parent=5 // pred_check
        _
      $region46: #{tpu_custom_call.1} parent=5 // pred_check_branch
        %327 = sbr.rel (%p324) target = $region48
      $region47: #{tpu_custom_call.1} parent=5 // pred_region
        %s328 = ssub.s32 %s16, 1
        %s329 = smul.u32 2, %s26
        %p330 = scmp.lt.s32.totalorder %s25, 1
        %s331 = scalar_select %p330, %s25, 1
        %p332 = scmp.lt.s32.totalorder %s329, 1
        %s333 = scalar_select %p332, %s329, 1
        %s334 = smul.addr %s331, 2
        %s335 = sadd.s32 %s333, %s334
        %s336 = smul.addr %s335, 4
        %s337 = scalar_lea.vmem %s0, %s336
        %p338 = pneg %p56
        %p339 = pneg %p53
        %s340 = smul.u32 %s26, 2
        %s341 = ssub.s32 %s340, 1
        %p342 = scmp.gt.s32.totalorder %s341, 0
        %s343 = scalar_select %p342, %s341, 0
        %p344 = scmp.lt.s32.totalorder %s25, 1
        %s345 = scalar_select %p344, %s25, 1
        %p346 = scmp.lt.s32.totalorder %s343, 1
        %s347 = scalar_select %p346, %s343, 1
        %s348 = smul.addr %s345, 2
        %s349 = sadd.s32 %s347, %s348
        %s350 = smul.addr %s349, 4
        %s351 = scalar_lea.vmem %s1, %s350
        %p352 = pneg %p92
        %p353 = pneg %p89
        %s354 = sadd.s32 %s26, 1
        %s355 = smul.u32 %s354, 2
        %p356 = scmp.lt.s32.totalorder %s355, 1
        %s357 = scalar_select %p356, %s355, 1
        %p358 = scmp.lt.s32.totalorder %s25, 1
        %s359 = scalar_select %p358, %s25, 1
        %p360 = scmp.lt.s32.totalorder %s357, 1
        %s361 = scalar_select %p360, %s357, 1
        %s362 = smul.addr %s359, 2
        %s363 = sadd.s32 %s361, %s362
        %s364 = smul.addr %s363, 4
        %s365 = scalar_lea.vmem %s2, %s364
        %p366 = pneg %p128
        %p367 = pneg %p125
        %p368 = pneg %p149
        %p369 = pneg %p146
        %p370 = pneg %p170
        %p371 = pneg %p167
        %p372 = pneg %p191
        %p373 = pneg %p188
        %p374 = pneg %p212
        %p375 = pneg %p209
        %p376 = pneg %p240
        %p377 = pneg %p237
        %s378 = sand.u32 %s227, 1
        %s379 = scalar_lea.sflag [#allocation3], %s378
        %s380 = sand.u32 %s227, 1
        %s381 = smul.addr %s380, 16
        %s382 = scalar_lea.vmem [#allocation2], %s381
        %s383 = smul.u32 2, %s26
        %p384 = scmp.lt.s32.totalorder %s25, 1
        %s385 = scalar_select %p384, %s25, 1
        %p386 = scmp.lt.s32.totalorder %s383, 1
        %s387 = scalar_select %p386, %s383, 1
        %s388 = smul.addr %s385, 2
        %s389 = sadd.s32 %s387, %s388
        %s390 = smul.addr %s389, 4
        %s391 = scalar_lea.vmem %s0, %s390
        %s392 = smul.u32 2, %s26
        %s393 = smul.u32 %s26, 2
        %s394 = ssub.s32 %s393, 1
        %p395 = scmp.gt.s32.totalorder %s394, 0
        %s396 = scalar_select %p395, %s394, 0
        %p397 = scmp.lt.s32.totalorder %s25, 1
        %s398 = scalar_select %p397, %s25, 1
        %p399 = scmp.lt.s32.totalorder %s396, 1
        %s400 = scalar_select %p399, %s396, 1
        %s401 = smul.addr %s398, 2
        %s402 = sadd.s32 %s400, %s401
        %s403 = smul.addr %s402, 4
        %s404 = scalar_lea.vmem %s1, %s403
        %s405 = smul.u32 %s26, 2
        %s406 = ssub.s32 %s405, 1
        %p407 = scmp.gt.s32.totalorder %s406, 0
        %s408 = scalar_select %p407, %s406, 0
        %s409 = sadd.s32 %s26, 1
        %s410 = smul.u32 %s409, 2
        %p411 = scmp.lt.s32.totalorder %s410, 1
        %s412 = scalar_select %p411, %s410, 1
        %p413 = scmp.lt.s32.totalorder %s25, 1
        %s414 = scalar_select %p413, %s25, 1
        %p415 = scmp.lt.s32.totalorder %s412, 1
        %s416 = scalar_select %p415, %s412, 1
        %s417 = smul.addr %s414, 2
        %s418 = sadd.s32 %s416, %s417
        %s419 = smul.addr %s418, 4
        %s420 = scalar_lea.vmem %s2, %s419
        %s421 = sadd.s32 %s26, 1
        %s422 = smul.u32 %s421, 2
        %p423 = scmp.lt.s32.totalorder %s422, 1
        %s424 = scalar_select %p423, %s422, 1
        %s425 = smul.u32 2, %s26
        %v427 = vld [vmem:[%s391] sm:$0xf]
        %v428 = vld [vmem:[%s391 + $0x4] sm:$0xf]
        %p429 = scmp.gt.s32.totalorder %s26, 0
        %s430 = scalar_select %p429, 1.0, 0.0
        %p432 = scmp.ne.f32.partialorder %s430, %s430
        %s433 = sshrl.u32 %s430, 16
        %s434 = sand.u32 %s433, 1
        %s435 = sadd.s32 32767, %s434
        %s436 = sadd.s32 %s430, %s435
        %s437 = sand.u32 %s436, 4294901760
        %s438 = scalar_select %p432, 2143289344, %s437
        %s440 = sshrl.u32 %s438, 16
        %p441 = scmp.lt.s32.totalorder %s26, 0
        %s442 = scalar_select %p441, 1.0, 0.0
        %p444 = scmp.ne.f32.partialorder %s442, %s442
        %s445 = sshrl.u32 %s442, 16
        %s446 = sand.u32 %s445, 1
        %s447 = sadd.s32 32767, %s446
        %s448 = sadd.s32 %s442, %s447
        %s449 = sand.u32 %s448, 4294901760
        %s450 = scalar_select %p444, 2143289344, %s449
        %s452 = sshrl.u32 %s450, 16
        %v453 = vld [vmem:[%s404] sm:$0x8]
        %s454 = sshll.u32 %s440, 16
        %s455 = sor.u32 %s440, %s454
        %v456 = vstv %s455
        %v458 = vmul.bf16 %v453, %v456
        %v459 = vld [vmem:[%s420] sm:$0x1]
        %s460 = sshll.u32 %s452, 16
        %s461 = sor.u32 %s452, %s460
        %v462 = vstv %s461
        %v464 = vmul.bf16 %v459, %v462
        %v466 = vunpack.c.l.b16 %v458
        %v467 = vpack.c.b16 %v466, %v466
        %v468 = vrot.slane %v467, 3
        %v471 = vunpack.c.l.b16 %v427
        %v472 = vunpack.c.l.b16 %v428
        %v473 = vpack.c.b16 %v472, %v471
        %v474 = vrot.slane %v473, 7
        %v476 = vunpack.c.l.b16 %v464
        %v477 = vpack.c.b16 %v476, %v476
        %v478 = vrot.slane %v477, 7
        %vm479 = vcmask 1040384
        %v482 = vsel %vm479, %v468, %v474
        %v484 = vsel %vm479, %v474, %v478
        %vm485 = vsmask.f32 7424
        %v486 = vshrl.u32 %v482, 16
        %v488 = vshll.u32 %v482, 16
        %v490 = vrot.slane %v488, 1
        %v491 = vor.u32 %v486, %v490
        %v492 = vshll.u32 %v484, 16
        %v494 = vrot.slane %v492, 1
        %v495 = vsel %vm485, %v491, %v494
        %496 = vrot.lane.b32.xlu0 %v495, 32
        %v497 = vpop.permute.xlu0 %496
        %vm500 = vcmask 1046528
        %v501 = vrot.slane %v482, 1
        %v502 = vrot.slane %v484, 1
        %v503 = vsel %vm500, %v501, %v502
        %504 = vrot.lane.b32.xlu0 %v503, 64
        %v505 = vpop.permute.xlu0 %504
        %vm506 = vsmask.f32 6400
        %v507 = vrot.slane %v486, 1
        %v508 = vrot.slane %v488, 2
        %v509 = vor.u32 %v507, %v508
        %v510 = vshrl.u32 %v484, 16
        %v512 = vrot.slane %v510, 1
        %v513 = vrot.slane %v492, 2
        %v514 = vor.u32 %v512, %v513
        %v515 = vsel %vm506, %v509, %v514
        %516 = vrot.lane.b32.xlu0 %v515, 96
        %v517 = vpop.permute.xlu0 %516
        %vm518 = vcmask 1045504
        %v519 = vrot.slane %v482, 2
        %v520 = vrot.slane %v484, 2
        %v521 = vsel %vm518, %v519, %v520
        %vm522 = vcmask 261120
        %v524 = vsel %vm522, %v482, %v497
        %vm525 = vcmask 523264
        %v527 = vsel %vm525, %v524, %v505
        %vm528 = vcmask 785408
        %v530 = vsel %vm528, %v527, %v517
        %v532 = vld [vmem:[%s3] sm:$0xf]
        %v533 = vld [vmem:[%s3 + $0x4] sm:$0xf]
        %v534 = vld [vmem:[%s3 + $0x8] sm:$0xf]
        %v535 = vld [vmem:[%s3 + $0xc] sm:$0xf]
        %v536 = vld [vmem:[%s3 + $0x10] sm:$0xf]
        %v537 = vld [vmem:[%s3 + $0x14] sm:$0xf]
        %v538 = vld [vmem:[%s3 + $0x18] sm:$0xf]
        %v539 = vld [vmem:[%s3 + $0x1c] sm:$0xf]
        %v540 = vld [vmem:[%s3 + $0x20] sm:$0xf]
        %v541 = vld [vmem:[%s3 + $0x24] sm:$0xf]
        %v542 = vld [vmem:[%s3 + $0x28] sm:$0xf]
        %v543 = vld [vmem:[%s3 + $0x2c] sm:$0xf]
        %v544 = vld [vmem:[%s3 + $0x30] sm:$0xf]
        %v545 = vld [vmem:[%s3 + $0x34] sm:$0xf]
        %v546 = vld [vmem:[%s3 + $0x38] sm:$0xf]
        %v547 = vld [vmem:[%s3 + $0x3c] sm:$0xf]
        %v548 = vld [vmem:[%s3 + $0x40] sm:$0xf]
        %v549 = vld [vmem:[%s3 + $0x44] sm:$0xf]
        %v550 = vld [vmem:[%s3 + $0x48] sm:$0xf]
        %v551 = vld [vmem:[%s3 + $0x4c] sm:$0xf]
        %v552 = vld [vmem:[%s4] sm:$0x1]
        %v554 = vlaneseq
        %v555 = vshrl.u32 %v554, 7
        %v556 = vsub.s32 0, %v555
        %v557 = vrot.slane %v552, %v556
        %v579 = vunpack.c.l.b16 %v532
        %v580 = vunpack.c.l.b16 %v533
        %v581 = vunpack.c.l.b16 %v534
        %v582 = vunpack.c.l.b16 %v535
        %v583 = vunpack.c.l.b16 %v536
        %v584 = vunpack.c.l.b16 %v537
        %v585 = vunpack.c.l.b16 %v538
        %v586 = vunpack.c.l.b16 %v539
        %v587 = vunpack.c.l.b16 %v540
        %v588 = vunpack.c.l.b16 %v541
        %v589 = vunpack.c.l.b16 %v542
        %v590 = vunpack.c.l.b16 %v543
        %v591 = vunpack.c.l.b16 %v544
        %v592 = vunpack.c.l.b16 %v545
        %v593 = vunpack.c.l.b16 %v546
        %v594 = vunpack.c.l.b16 %v547
        %v595 = vunpack.c.l.b16 %v548
        %v596 = vunpack.c.l.b16 %v549
        %v597 = vunpack.c.l.b16 %v550
        %v598 = vunpack.c.l.b16 %v551
        %v599 = vpack.c.b16 %v580, %v579
        %v600 = vpack.c.b16 %v582, %v581
        %v601 = vpack.c.b16 %v584, %v583
        %v602 = vpack.c.b16 %v586, %v585
        %v603 = vpack.c.b16 %v588, %v587
        %v604 = vpack.c.b16 %v590, %v589
        %v605 = vpack.c.b16 %v592, %v591
        %v606 = vpack.c.b16 %v594, %v593
        %v607 = vpack.c.b16 %v596, %v595
        %v608 = vpack.c.b16 %v598, %v597
        %v620 = vsel %vm522, %v521, 0
        %622 = vmatprep.subr.bf16.mxu0 0
        %623 = vmatpush1.bf16.msra.mxu0 %v599
        %624 = vmatprep.subr.bf16.mxu0 0
        %625 = vmatpush1.bf16.msra.mxu0 %v600
        %626 = vmatprep.subr.bf16.mxu0 0
        %627 = vmatpush1.bf16.msra.mxu0 %v601
        %628 = vmatprep.subr.bf16.mxu0 0
        %629 = vmatpush1.bf16.msra.mxu0 %v602
        %630 = vmatprep.subr.bf16.mxu0 0
        %631 = vmatpush1.bf16.msra.mxu0 %v603
        %632 = vmatprep.subr.bf16.mxu0 0
        %633 = vmatpush1.bf16.msra.mxu0 %v604
        %634 = vmatprep.subr.bf16.mxu0 0
        %635 = vmatpush1.bf16.msra.mxu0 %v605
        %636 = vmatprep.subr.bf16.mxu0 0
        %637 = vmatpush1.bf16.msra.mxu0 %v606
        %638 = vmatprep.subr.bf16.mxu0 0
        %639 = vmatpush1.bf16.msra.mxu0 %v607
        %640 = vmatprep.subr.bf16.mxu0 0
        %641 = vmatpush1.bf16.msra.mxu0 %v608
        %642 = vmatprep.subr.bf16.mxu0 0
        %643 = vmatpush1.bf16.msra.mxu0 0
        %644 = vmatprep.subr.bf16.mxu0 0
        %645 = vmatpush1.bf16.msra.mxu0 0
        %646 = vmatprep.subr.bf16.mxu0 0
        %647 = vmatpush1.bf16.msra.mxu0 0
        %648 = vmatprep.subr.bf16.mxu0 0
        %649 = vmatpush1.bf16.msra.mxu0 0
        %650 = vmatprep.subr.bf16.mxu0 0
        %651 = vmatpush1.bf16.msra.mxu0 0
        %652 = vmatprep.subr.bf16.mxu0 0
        %653 = vmatpush1.bf16.msra.mxu0 0
        %654 = vmatprep.mubr.bf16.mxu0 %v620
        %655 = vmatmul.mubr.bf16.gmra.mrb[0].mxu0 %v530
        %v656 = vpop.f32.mrb[0].mxu0
        %v657 = vadd.f32 %v557, %v656
        %v658 = vpop.f32.mrb[0].mxu0
        %v659 = vpop.f32.mrb[0].mxu0
        %v660 = vadd.f32 %v557, %v659
        %v661 = vpop.f32.mrb[0].mxu0
        %662 = vdwg.mxu0
        %v663 = vmax.f32 %v657, 0.0
        %v664 = vmax.f32 %v660, 0.0
        %v665 = vpack.c.bf16 %v664, %v663
        %v666 = vld [vmem:[%s5] sm:$0xf]
        %v667 = vld [vmem:[%s5 + $0x4] sm:$0xf]
        %v668 = vld [vmem:[%s5 + $0x8] sm:$0xf]
        %v669 = vld [vmem:[%s5 + $0xc] sm:$0xf]
        %v670 = vld [vmem:[%s6] sm:$0x1]
        %v672 = vlaneseq
        %v673 = vshrl.u32 %v672, 7
        %v674 = vsub.s32 0, %v673
        %v675 = vrot.slane %v670, %v674
        %v681 = vunpack.c.l.b16 %v666
        %v682 = vunpack.c.l.b16 %v667
        %v683 = vunpack.c.l.b16 %v668
        %v684 = vunpack.c.l.b16 %v669
        %v685 = vpack.c.b16 %v682, %v681
        %v686 = vpack.c.b16 %v684, %v683
        %v690 = vsel %vm522, %v665, 0
        %692 = vmatprep.subr.bf16.mxu0 0
        %693 = vmatpush1.bf16.msra.mxu0 %v685
        %694 = vmatprep.subr.bf16.mxu0 0
        %695 = vmatpush1.bf16.msra.mxu0 %v686
        %696 = vmatprep.subr.bf16.mxu0 0
        %697 = vmatpush1.bf16.msra.mxu0 0
        %698 = vmatprep.subr.bf16.mxu0 0
        %699 = vmatpush1.bf16.msra.mxu0 0
        %700 = vmatprep.subr.bf16.mxu0 0
        %701 = vmatpush1.bf16.msra.mxu0 0
        %702 = vmatprep.subr.bf16.mxu0 0
        %703 = vmatpush1.bf16.msra.mxu0 0
        %704 = vmatprep.subr.bf16.mxu0 0
        %705 = vmatpush1.bf16.msra.mxu0 0
        %706 = vmatprep.subr.bf16.mxu0 0
        %707 = vmatpush1.bf16.msra.mxu0 0
        %708 = vmatprep.subr.bf16.mxu0 0
        %709 = vmatpush1.bf16.msra.mxu0 0
        %710 = vmatprep.subr.bf16.mxu0 0
        %711 = vmatpush1.bf16.msra.mxu0 0
        %712 = vmatprep.subr.bf16.mxu0 0
        %713 = vmatpush1.bf16.msra.mxu0 0
        %714 = vmatprep.subr.bf16.mxu0 0
        %715 = vmatpush1.bf16.msra.mxu0 0
        %716 = vmatprep.subr.bf16.mxu0 0
        %717 = vmatpush1.bf16.msra.mxu0 0
        %718 = vmatprep.subr.bf16.mxu0 0
        %719 = vmatpush1.bf16.msra.mxu0 0
        %720 = vmatprep.subr.bf16.mxu0 0
        %721 = vmatpush1.bf16.msra.mxu0 0
        %722 = vmatprep.subr.bf16.mxu0 0
        %723 = vmatpush1.bf16.msra.mxu0 0
        %724 = vmatprep.mubr.bf16.mxu0 0
        %725 = vmatmul.mubr.bf16.gmra.mrb[0].mxu0 %v690
        %v726 = vpop.f32.mrb[0].mxu0
        %v727 = vadd.f32 %v675, %v726
        %v728 = vpop.f32.mrb[0].mxu0
        %v729 = vpop.f32.mrb[0].mxu0
        %v730 = vadd.f32 %v675, %v729
        %v731 = vpop.f32.mrb[0].mxu0
        %732 = vdwg.mxu0
        %v733 = vunpack.c.l.bf16 %v427
        %v734 = vunpack.c.l.bf16 %v428
        %v735 = vadd.f32 %v727, %v733
        %v736 = vadd.f32 %v730, %v734
        %737 = vst.msk [vmem:[%s382] sm:$0xff] %vm522, %v735
        %738 = vst.msk [vmem:[%s382 + $0x8] sm:$0xff] %vm522, %v736
        %s739 = sand.u32 %s227, 1
        %s740 = scalar_lea.sflag [#allocation3], %s739
        %s741 = sand.u32 %s227, 1
        %s742 = smul.addr %s741, 16
        %s743 = scalar_lea.vmem [#allocation2], %s742
        // Predicated region
        $region49: #{tpu_custom_call.1} parent=47 // pred_check
          %p744 = pneg %p237
        $region50: #{tpu_custom_call.1} parent=47 // pred_check_branch
          %746 = sbr.rel (%p744) target = $region52
        $region51: #{tpu_custom_call.1} parent=47 // pred_region
          %s747 = smul.u32 2, %s26
          %s749 = ssub.s32 256, 256
          %750 = vsyncadd %s740, %s749
          %s751 = smul.addr %s25, 2
          %s752 = sadd.s32 %s747, %s751
          %s753 = smul.addr %s752, 128
          %s754 = scalar_lea.hbm %s7, %s753
          %s755 = sshll.u32 %s743, 4
          %s756 = int_to_ptr.vmem [resolvable:$true] %s755
          %761 = dma.vmem_to_hbm [thread:$0]  %s756, 256, %s754, %s740, 128, 128, 8
        $region52: #{tpu_custom_call.1} parent=47 // pred_fallthru
          _
      $region48: #{tpu_custom_call.1} parent=5 // pred_fallthru
        _
      %p762 = scmp.le.s32.totalorder 2, %s16
      // Predicated region
      $region53: #{tpu_custom_call.1} parent=5 // pred_check
        %p763 = pneg %p762
      $region54: #{tpu_custom_call.1} parent=5 // pred_check_branch
        %765 = sbr.rel (%p763) target = $region56
      $region55: #{tpu_custom_call.1} parent=5 // pred_region
        %s766 = ssub.s32 %s16, 2
        // Predicated region
        $region57: #{tpu_custom_call.1} parent=55 // pred_check
          %p767 = pneg %p243
        $region58: #{tpu_custom_call.1} parent=55 // pred_check_branch
          %769 = sbr.rel (%p767) target = $region60
        $region59: #{tpu_custom_call.1} parent=55 // pred_region
          %s770 = sand.u32 %s228, 1
          %s771 = scalar_lea.sflag [#allocation3], %s770
          %s772 = sand.u32 %s228, 1
          %s773 = smul.addr %s772, 16
          %s774 = scalar_lea.vmem [#allocation2], %s773
          %775 = dma.done %s771, 256
        $region60: #{tpu_custom_call.1} parent=55 // pred_fallthru
          _
      $region56: #{tpu_custom_call.1} parent=5 // pred_fallthru
        _
    $region6: #{tpu_custom_call.1} parent=1 // loop_footer
      %s20 = sadd.s32 1, %s16
    $region7: #{tpu_custom_call.1} parent=1 // loop_footer_branch
      %15 = sbr.rel target = $region3
    $region8: #{tpu_custom_call.1} parent=1 // loop_exit
      _
    %776 = vsyncpa [#allocation3], 1
    %s777 = scalar_lea.sflag [#allocation3], 1
    %778 = vsyncpa %s777, 1

</llo_original>
